<compile_context>
chip_gen: v6e
topology: v6e:2x2x1
jax: 0.10.0
libtpu: 0.0.40
codegen_flags: <defaults>
</compile_context>

<pallas_src>
import functools

import jax
import jax.numpy as jnp
from jax.experimental import pallas as pl
from jax.experimental.pallas import tpu as pltpu

LANE = 128          # lane width (last-dim tiling unit)
SUBLANE = 8         # f32 sublane tiling unit
TILE_B_MAX = 256    # batch rows per grid step (fills MXU, modest VMEM)
VMEM_LIMIT = 48 << 20  # leave headroom under v7x's 64 MiB physical VMEM


def _round_up(n, m):
    return ((n + m - 1) // m) * m


def _pad2(a, rows, cols):
    return jnp.pad(a, ((0, rows - a.shape[0]), (0, cols - a.shape[1])))


def residual_net_kernel(
    x_ref,
    w0_ref, b0_ref,
    w1a_ref, b1a_ref, w1b_ref, b1b_ref,
    w2a_ref, b2a_ref, w2b_ref, b2b_ref,
    wf_ref, bf_ref,
    out_ref,
    *, compute_dtype,
):
    """Full ResidualNet forward for one batch tile (initial, 2 blocks, final)."""

    def linear(a, w_ref, b_ref):
        # Matmul inputs in compute_dtype (f32 or bf16), f32 accumulation,
        # f32 bias add.
        return (
            jnp.dot(a.astype(compute_dtype), w_ref[...],
                    preferred_element_type=jnp.float32)
            + b_ref[...]
        )

    h = linear(x_ref[...], w0_ref, b0_ref)

    for wa, ba, wb, bb in (
        (w1a_ref, b1a_ref, w1b_ref, b1b_ref),
        (w2a_ref, b2a_ref, w2b_ref, b2b_ref),
    ):
        t = jnp.maximum(h, 0.0)           # ReLU in f32 (VPU)
        t = linear(t, wa, ba)
        t = jnp.maximum(t, 0.0)
        # TODO(synk): dropout with p>0 in train mode would need pltpu.prng_*;
        # p=0.0 (eval) -> identity.
        t = linear(t, wb, bb)
        h = h + t                          # residual add in f32

    out_ref[...] = linear(h, wf_ref, bf_ref).astype(out_ref.dtype)


@functools.partial(jax.jit, static_argnames=("compute_dtype",))
def residual_net_forward(x, params, compute_dtype=jnp.float32):
    """params: dict of (already-transposed [in,out]) weights and (1,out) biases."""
    batch, in_features = x.shape
    hidden = params["w0"].shape[1]
    out_features = params["wf"].shape[1]

    # Lane-dense feature padding (exact: zero rows/cols contribute nothing).
    in_p = _round_up(in_features, LANE)
    hid_p = _round_up(hidden, LANE)
    out_p = _round_up(out_features, LANE)

    # Batch tiling: pad to a sublane multiple; cap the tile at TILE_B_MAX.
    b_pad = _round_up(batch, SUBLANE)
    if b_pad > TILE_B_MAX:
        b_pad = _round_up(batch, TILE_B_MAX)
        tile_b = TILE_B_MAX
    else:
        tile_b = b_pad
    n_tiles = b_pad // tile_b

    x_p = jnp.pad(x, ((0, b_pad - batch), (0, in_p - in_features)))

    wdt = compute_dtype
    w0 = _pad2(params["w0"], in_p, hid_p).astype(wdt)
    w1a = _pad2(params["w1a"], hid_p, hid_p).astype(wdt)
    w1b = _pad2(params["w1b"], hid_p, hid_p).astype(wdt)
    w2a = _pad2(params["w2a"], hid_p, hid_p).astype(wdt)
    w2b = _pad2(params["w2b"], hid_p, hid_p).astype(wdt)
    wf = _pad2(params["wf"], hid_p, out_p).astype(wdt)
    # Biases stay f32 (added to the f32 accumulator).
    b0 = _pad2(params["b0"], 1, hid_p)
    b1a = _pad2(params["b1a"], 1, hid_p)
    b1b = _pad2(params["b1b"], 1, hid_p)
    b2a = _pad2(params["b2a"], 1, hid_p)
    b2b = _pad2(params["b2b"], 1, hid_p)
    bf = _pad2(params["bf"], 1, out_p)

    operands = (x_p, w0, b0, w1a, b1a, w1b, b1b, w2a, b2a, w2b, b2b, wf, bf)

    # Static VMEM footprint check: resident weights + biases + double-buffered
    # x/out tiles + f32 activation temporaries must fit with headroom.
    w_itemsize = jnp.dtype(wdt).itemsize
    weight_bytes = (in_p * hid_p + 4 * hid_p * hid_p + hid_p * out_p) * w_itemsize
    bias_bytes = (5 * hid_p + out_p) * 4
    io_block_bytes = 2 * tile_b * (in_p + out_p) * x.dtype.itemsize
    act_bytes = 4 * tile_b * hid_p * 4
    footprint = weight_bytes + bias_bytes + io_block_bytes + act_bytes
    assert footprint < VMEM_LIMIT, (
        f"ResidualNet weights+tiles ({footprint} B) exceed VMEM budget "
        f"({VMEM_LIMIT} B); add a K/N tiling grid axis for this hidden size."
    )

    flops = 2 * b_pad * (in_p * hid_p + 4 * hid_p * hid_p + hid_p * out_p)
    bytes_accessed = (
        b_pad * in_p * x.dtype.itemsize
        + weight_bytes + bias_bytes
        + b_pad * out_p * x.dtype.itemsize
    )

    # x/out: tiled over batch; weights/biases: constant block (VMEM-resident).
    in_specs = [pl.BlockSpec((tile_b, in_p), lambda i: (i, 0))]
    in_specs += [pl.BlockSpec(op.shape, lambda i: (0, 0)) for op in operands[1:]]

    out_padded = pl.pallas_call(
        functools.partial(residual_net_kernel, compute_dtype=compute_dtype),
        out_shape=jax.ShapeDtypeStruct((b_pad, out_p), x.dtype),
        grid=(n_tiles,),
        in_specs=in_specs,
        out_specs=pl.BlockSpec((tile_b, out_p), lambda i: (i, 0)),
        compiler_params=pltpu.CompilerParams(
            dimension_semantics=("parallel",),
            vmem_limit_bytes=VMEM_LIMIT,
        ),
        cost_estimate=pl.CostEstimate(
            flops=flops, transcendentals=0, bytes_accessed=bytes_accessed
        ),
    )(*operands)

    return out_padded[:batch, :out_features]


def init_params(key, in_features, hidden_features, out_features):
    """Deterministic parameter init mimicking the PyTorch module's __init__.

    nn.Linear default: U(-1/sqrt(fan_in), 1/sqrt(fan_in)) for weight and bias.
    Second linear of each residual block: zero_initialization -> U(-0.001, 0.001).
    Weights are returned pre-transposed to [in, out]; biases as [1, out].
    """
    def linear(k, fan_in, fan_out, bound=None):
        if bound is None:
            bound = 1.0 / jnp.sqrt(jnp.float32(fan_in))
        kw, kb = jax.random.split(k)
        w = jax.random.uniform(kw, (fan_out, fan_in), jnp.float32, -bound, bound)
        b = jax.random.uniform(kb, (fan_out,), jnp.float32, -bound, bound)
        return w.T, b.reshape(1, fan_out)

    keys = jax.random.split(key, 6)
    w0, b0 = linear(keys[0], in_features, hidden_features)
    w1a, b1a = linear(keys[1], hidden_features, hidden_features)
    w1b, b1b = linear(keys[2], hidden_features, hidden_features, bound=0.001)
    w2a, b2a = linear(keys[3], hidden_features, hidden_features)
    w2b, b2b = linear(keys[4], hidden_features, hidden_features, bound=0.001)
    wf, bf = linear(keys[5], hidden_features, out_features)
    return dict(
        w0=w0, b0=b0,
        w1a=w1a, b1a=b1a, w1b=w1b, b1b=b1b,
        w2a=w2a, b2a=b2a, w2b=w2b, b2b=b2b,
        wf=wf, bf=bf,
    )


def reference_forward(x, p):
    """Pure-JAX reference matching the PyTorch forward semantics."""
    h = x @ p["w0"] + p["b0"]
    t = jax.nn.relu(h) @ p["w1a"] + p["b1a"]
    t = jax.nn.relu(t) @ p["w1b"] + p["b1b"]
    h = h + t
    t = jax.nn.relu(h) @ p["w2a"] + p["b2a"]
    t = jax.nn.relu(t) @ p["w2b"] + p["b2b"]
    h = h + t
    return h @ p["wf"] + p["bf"]


if __name__ == "__main__":
    in_features = 16
    hidden_features = 128
    out_features = 16

    key = jax.random.PRNGKey(0)
    kx, kx2, kp = jax.random.split(key, 3)
    params = init_params(kp, in_features, hidden_features, out_features)

    # Small demo batch (single grid step), f32 path: exact match.
    x = jax.random.normal(kx, (8, in_features), dtype=jnp.float32)
    out = jax.block_until_ready(residual_net_forward(x, params))
    ref = reference_forward(x, params)
    assert out.shape == (8, out_features)
    assert jnp.allclose(out, ref, atol=1e-5, rtol=1e-5), "f32 kernel mismatch"

    # Multi-tile batch (exercises the batch grid + padding), f32 path.
    x2 = jax.random.normal(kx2, (300, in_features), dtype=jnp.float32)
    out2 = jax.block_until_ready(residual_net_forward(x2, params))
    ref2 = reference_forward(x2, params)
    assert out2.shape == (300, out_features)
    assert jnp.allclose(out2, ref2, atol=1e-5, rtol=1e-5), "tiled kernel mismatch"

    # bf16 matmul inputs / f32 accumulation path (v6e/v7x fast path).
    out_bf16 = jax.block_until_ready(
        residual_net_forward(x2, params, compute_dtype=jnp.bfloat16)
    )
    assert jnp.allclose(out_bf16, ref2, atol=5e-2, rtol=5e-2), "bf16 kernel mismatch"

    print("KERNEL_OK")
</pallas_src>

<mosaic_0001>
module attributes {stable_mosaic.version = 11 : i64} {
  func.func @residual_net_kernel(%arg0: i32, %arg1: memref<8x128xf32, #tpu.memory_space<vmem>>, %arg2: memref<128x128xf32, #tpu.memory_space<vmem>>, %arg3: memref<1x128xf32, #tpu.memory_space<vmem>>, %arg4: memref<128x128xf32, #tpu.memory_space<vmem>>, %arg5: memref<1x128xf32, #tpu.memory_space<vmem>>, %arg6: memref<128x128xf32, #tpu.memory_space<vmem>>, %arg7: memref<1x128xf32, #tpu.memory_space<vmem>>, %arg8: memref<128x128xf32, #tpu.memory_space<vmem>>, %arg9: memref<1x128xf32, #tpu.memory_space<vmem>>, %arg10: memref<128x128xf32, #tpu.memory_space<vmem>>, %arg11: memref<1x128xf32, #tpu.memory_space<vmem>>, %arg12: memref<128x128xf32, #tpu.memory_space<vmem>>, %arg13: memref<1x128xf32, #tpu.memory_space<vmem>>, %arg14: memref<8x128xf32, #tpu.memory_space<vmem>>) attributes {dimension_semantics = [#tpu.dimension_semantics<parallel>], iteration_bounds = array<i64: 1>, scalar_prefetch = 0 : i64, scratch_operands = 0 : i64, tpu.core_type = #tpu.core_type<tc>, window_params = [{transform_indices = @transform_0, window_bounds = array<i64: 8, 128>}, {pipeline_mode = #tpu.pipeline_mode<synchronous>, transform_indices = @transform_1, window_bounds = array<i64: 128, 128>}, {pipeline_mode = #tpu.pipeline_mode<synchronous>, transform_indices = @transform_2, window_bounds = array<i64: 1, 128>}, {pipeline_mode = #tpu.pipeline_mode<synchronous>, transform_indices = @transform_3, window_bounds = array<i64: 128, 128>}, {pipeline_mode = #tpu.pipeline_mode<synchronous>, transform_indices = @transform_4, window_bounds = array<i64: 1, 128>}, {pipeline_mode = #tpu.pipeline_mode<synchronous>, transform_indices = @transform_5, window_bounds = array<i64: 128, 128>}, {pipeline_mode = #tpu.pipeline_mode<synchronous>, transform_indices = @transform_6, window_bounds = array<i64: 1, 128>}, {pipeline_mode = #tpu.pipeline_mode<synchronous>, transform_indices = @transform_7, window_bounds = array<i64: 128, 128>}, {pipeline_mode = #tpu.pipeline_mode<synchronous>, transform_indices = @transform_8, window_bounds = array<i64: 1, 128>}, {pipeline_mode = #tpu.pipeline_mode<synchronous>, transform_indices = @transform_9, window_bounds = array<i64: 128, 128>}, {pipeline_mode = #tpu.pipeline_mode<synchronous>, transform_indices = @transform_10, window_bounds = array<i64: 1, 128>}, {pipeline_mode = #tpu.pipeline_mode<synchronous>, transform_indices = @transform_11, window_bounds = array<i64: 128, 128>}, {pipeline_mode = #tpu.pipeline_mode<synchronous>, transform_indices = @transform_12, window_bounds = array<i64: 1, 128>}, {transform_indices = @transform_13, window_bounds = array<i64: 8, 128>}]} {
    %c0 = arith.constant 0 : index
    %c0_0 = arith.constant 0 : index
    %0 = vector.load %arg1[%c0, %c0_0] : memref<8x128xf32, #tpu.memory_space<vmem>>, vector<8x128xf32>
    %c0_1 = arith.constant 0 : index
    %c0_2 = arith.constant 0 : index
    %1 = vector.load %arg2[%c0_1, %c0_2] : memref<128x128xf32, #tpu.memory_space<vmem>>, vector<128x128xf32>
    %cst = arith.constant dense<0.000000e+00> : vector<8x128xf32>
    %2 = tpu.matmul %0, %1, %cst {dimension_numbers = #tpu.dot_dimension_numbers<[1], [0], [0], [1], [0, 0, 1, 1], [], []>} : vector<8x128xf32>, vector<128x128xf32>, vector<8x128xf32> -> vector<8x128xf32>
    %c0_3 = arith.constant 0 : index
    %c0_4 = arith.constant 0 : index
    %3 = vector.load %arg3[%c0_3, %c0_4] : memref<1x128xf32, #tpu.memory_space<vmem>>, vector<1x128xf32>
    %4 = vector.broadcast %3 : vector<1x128xf32> to vector<8x128xf32>
    %5 = arith.addf %2, %4 : vector<8x128xf32>
    %cst_5 = arith.constant 0.000000e+00 : f32
    %6 = vector.broadcast %cst_5 : f32 to vector<8x128xf32>
    %7 = arith.maximumf %5, %6 : vector<8x128xf32>
    %c0_6 = arith.constant 0 : index
    %c0_7 = arith.constant 0 : index
    %8 = vector.load %arg4[%c0_6, %c0_7] : memref<128x128xf32, #tpu.memory_space<vmem>>, vector<128x128xf32>
    %cst_8 = arith.constant dense<0.000000e+00> : vector<8x128xf32>
    %9 = tpu.matmul %7, %8, %cst_8 {dimension_numbers = #tpu.dot_dimension_numbers<[1], [0], [0], [1], [0, 0, 1, 1], [], []>} : vector<8x128xf32>, vector<128x128xf32>, vector<8x128xf32> -> vector<8x128xf32>
    %c0_9 = arith.constant 0 : index
    %c0_10 = arith.constant 0 : index
    %10 = vector.load %arg5[%c0_9, %c0_10] : memref<1x128xf32, #tpu.memory_space<vmem>>, vector<1x128xf32>
    %11 = vector.broadcast %10 : vector<1x128xf32> to vector<8x128xf32>
    %12 = arith.addf %9, %11 : vector<8x128xf32>
    %cst_11 = arith.constant 0.000000e+00 : f32
    %13 = vector.broadcast %cst_11 : f32 to vector<8x128xf32>
    %14 = arith.maximumf %12, %13 : vector<8x128xf32>
    %c0_12 = arith.constant 0 : index
    %c0_13 = arith.constant 0 : index
    %15 = vector.load %arg6[%c0_12, %c0_13] : memref<128x128xf32, #tpu.memory_space<vmem>>, vector<128x128xf32>
    %cst_14 = arith.constant dense<0.000000e+00> : vector<8x128xf32>
    %16 = tpu.matmul %14, %15, %cst_14 {dimension_numbers = #tpu.dot_dimension_numbers<[1], [0], [0], [1], [0, 0, 1, 1], [], []>} : vector<8x128xf32>, vector<128x128xf32>, vector<8x128xf32> -> vector<8x128xf32>
    %c0_15 = arith.constant 0 : index
    %c0_16 = arith.constant 0 : index
    %17 = vector.load %arg7[%c0_15, %c0_16] : memref<1x128xf32, #tpu.memory_space<vmem>>, vector<1x128xf32>
    %18 = vector.broadcast %17 : vector<1x128xf32> to vector<8x128xf32>
    %19 = arith.addf %16, %18 : vector<8x128xf32>
    %20 = arith.addf %5, %19 : vector<8x128xf32>
    %cst_17 = arith.constant 0.000000e+00 : f32
    %21 = vector.broadcast %cst_17 : f32 to vector<8x128xf32>
    %22 = arith.maximumf %20, %21 : vector<8x128xf32>
    %c0_18 = arith.constant 0 : index
    %c0_19 = arith.constant 0 : index
    %23 = vector.load %arg8[%c0_18, %c0_19] : memref<128x128xf32, #tpu.memory_space<vmem>>, vector<128x128xf32>
    %cst_20 = arith.constant dense<0.000000e+00> : vector<8x128xf32>
    %24 = tpu.matmul %22, %23, %cst_20 {dimension_numbers = #tpu.dot_dimension_numbers<[1], [0], [0], [1], [0, 0, 1, 1], [], []>} : vector<8x128xf32>, vector<128x128xf32>, vector<8x128xf32> -> vector<8x128xf32>
    %c0_21 = arith.constant 0 : index
    %c0_22 = arith.constant 0 : index
    %25 = vector.load %arg9[%c0_21, %c0_22] : memref<1x128xf32, #tpu.memory_space<vmem>>, vector<1x128xf32>
    %26 = vector.broadcast %25 : vector<1x128xf32> to vector<8x128xf32>
    %27 = arith.addf %24, %26 : vector<8x128xf32>
    %cst_23 = arith.constant 0.000000e+00 : f32
    %28 = vector.broadcast %cst_23 : f32 to vector<8x128xf32>
    %29 = arith.maximumf %27, %28 : vector<8x128xf32>
    %c0_24 = arith.constant 0 : index
    %c0_25 = arith.constant 0 : index
    %30 = vector.load %arg10[%c0_24, %c0_25] : memref<128x128xf32, #tpu.memory_space<vmem>>, vector<128x128xf32>
    %cst_26 = arith.constant dense<0.000000e+00> : vector<8x128xf32>
    %31 = tpu.matmul %29, %30, %cst_26 {dimension_numbers = #tpu.dot_dimension_numbers<[1], [0], [0], [1], [0, 0, 1, 1], [], []>} : vector<8x128xf32>, vector<128x128xf32>, vector<8x128xf32> -> vector<8x128xf32>
    %c0_27 = arith.constant 0 : index
    %c0_28 = arith.constant 0 : index
    %32 = vector.load %arg11[%c0_27, %c0_28] : memref<1x128xf32, #tpu.memory_space<vmem>>, vector<1x128xf32>
    %33 = vector.broadcast %32 : vector<1x128xf32> to vector<8x128xf32>
    %34 = arith.addf %31, %33 : vector<8x128xf32>
    %35 = arith.addf %20, %34 : vector<8x128xf32>
    %c0_29 = arith.constant 0 : index
    %c0_30 = arith.constant 0 : index
    %36 = vector.load %arg12[%c0_29, %c0_30] : memref<128x128xf32, #tpu.memory_space<vmem>>, vector<128x128xf32>
    %cst_31 = arith.constant dense<0.000000e+00> : vector<8x128xf32>
    %37 = tpu.matmul %35, %36, %cst_31 {dimension_numbers = #tpu.dot_dimension_numbers<[1], [0], [0], [1], [0, 0, 1, 1], [], []>} : vector<8x128xf32>, vector<128x128xf32>, vector<8x128xf32> -> vector<8x128xf32>
    %c0_32 = arith.constant 0 : index
    %c0_33 = arith.constant 0 : index
    %38 = vector.load %arg13[%c0_32, %c0_33] : memref<1x128xf32, #tpu.memory_space<vmem>>, vector<1x128xf32>
    %39 = vector.broadcast %38 : vector<1x128xf32> to vector<8x128xf32>
    %40 = arith.addf %37, %39 : vector<8x128xf32>
    %c0_34 = arith.constant 0 : index
    %c0_35 = arith.constant 0 : index
    %41 = vector.load %arg14[%c0_34, %c0_35] : memref<8x128xf32, #tpu.memory_space<vmem>>, vector<8x128xf32>
    tpu.vector_store %arg14[%c0_34, %c0_35], %40 {strides = array<i32>} : memref<8x128xf32, #tpu.memory_space<vmem>>, vector<8x128xf32>,
    return
  }
  func.func @transform_0(%arg0: i32) -> (i32, i32) {
    %c0_i32 = arith.constant 0 : i32
    %c0_i32_0 = arith.constant 0 : i32
    return %arg0, %c0_i32 : i32, i32
  }
  func.func @transform_1(%arg0: i32) -> (i32, i32) {
    %c0_i32 = arith.constant 0 : i32
    %c0_i32_0 = arith.constant 0 : i32
    %c0_i32_1 = arith.constant 0 : i32
    return %c0_i32, %c0_i32_0 : i32, i32
  }
  func.func @transform_2(%arg0: i32) -> (i32, i32) {
    %c0_i32 = arith.constant 0 : i32
    %c0_i32_0 = arith.constant 0 : i32
    %c0_i32_1 = arith.constant 0 : i32
    return %c0_i32, %c0_i32_0 : i32, i32
  }
  func.func @transform_3(%arg0: i32) -> (i32, i32) {
    %c0_i32 = arith.constant 0 : i32
    %c0_i32_0 = arith.constant 0 : i32
    %c0_i32_1 = arith.constant 0 : i32
    return %c0_i32, %c0_i32_0 : i32, i32
  }
  func.func @transform_4(%arg0: i32) -> (i32, i32) {
    %c0_i32 = arith.constant 0 : i32
    %c0_i32_0 = arith.constant 0 : i32
    %c0_i32_1 = arith.constant 0 : i32
    return %c0_i32, %c0_i32_0 : i32, i32
  }
  func.func @transform_5(%arg0: i32) -> (i32, i32) {
    %c0_i32 = arith.constant 0 : i32
    %c0_i32_0 = arith.constant 0 : i32
    %c0_i32_1 = arith.constant 0 : i32
    return %c0_i32, %c0_i32_0 : i32, i32
  }
  func.func @transform_6(%arg0: i32) -> (i32, i32) {
    %c0_i32 = arith.constant 0 : i32
    %c0_i32_0 = arith.constant 0 : i32
    %c0_i32_1 = arith.constant 0 : i32
    return %c0_i32, %c0_i32_0 : i32, i32
  }
  func.func @transform_7(%arg0: i32) -> (i32, i32) {
    %c0_i32 = arith.constant 0 : i32
    %c0_i32_0 = arith.constant 0 : i32
    %c0_i32_1 = arith.constant 0 : i32
    return %c0_i32, %c0_i32_0 : i32, i32
  }
  func.func @transform_8(%arg0: i32) -> (i32, i32) {
    %c0_i32 = arith.constant 0 : i32
    %c0_i32_0 = arith.constant 0 : i32
    %c0_i32_1 = arith.constant 0 : i32
    return %c0_i32, %c0_i32_0 : i32, i32
  }
  func.func @transform_9(%arg0: i32) -> (i32, i32) {
    %c0_i32 = arith.constant 0 : i32
    %c0_i32_0 = arith.constant 0 : i32
    %c0_i32_1 = arith.constant 0 : i32
    return %c0_i32, %c0_i32_0 : i32, i32
  }
  func.func @transform_10(%arg0: i32) -> (i32, i32) {
    %c0_i32 = arith.constant 0 : i32
    %c0_i32_0 = arith.constant 0 : i32
    %c0_i32_1 = arith.constant 0 : i32
    return %c0_i32, %c0_i32_0 : i32, i32
  }
  func.func @transform_11(%arg0: i32) -> (i32, i32) {
    %c0_i32 = arith.constant 0 : i32
    %c0_i32_0 = arith.constant 0 : i32
    %c0_i32_1 = arith.constant 0 : i32
    return %c0_i32, %c0_i32_0 : i32, i32
  }
  func.func @transform_12(%arg0: i32) -> (i32, i32) {
    %c0_i32 = arith.constant 0 : i32
    %c0_i32_0 = arith.constant 0 : i32
    %c0_i32_1 = arith.constant 0 : i32
    return %c0_i32, %c0_i32_0 : i32, i32
  }
  func.func @transform_13(%arg0: i32) -> (i32, i32) {
    %c0_i32 = arith.constant 0 : i32
    %c0_i32_0 = arith.constant 0 : i32
    return %arg0, %c0_i32 : i32, i32
  }
}

</mosaic_0001>

<llo_original>
// kernel: residual_net_forward.1
$region0: #{residual_net_forward.1}
  #allocation0 [shape = 'u32[]', space=smem, size = 0x4, offset = 0x4, fixed_abs, tag = 'smem constant byte address 0x4 - core index']
  #allocation1 [shape = 'u32[144,128]{1,0:T(1,128)}', space=vmem, size = 0x12000, scoped, tag = 'internal scratch']
  %s0 = inlined_call_operand.vmem [shape: f32[8,128], index: 0, kind: input, shape index: {}]
  %s1 = inlined_call_operand.vmem [shape: f32[128,128], index: 1, kind: input, shape index: {}]
  %s2 = inlined_call_operand.vmem [shape: f32[1,128], index: 2, kind: input, shape index: {}]
  %s3 = inlined_call_operand.vmem [shape: f32[128,128], index: 3, kind: input, shape index: {}]
  %s4 = inlined_call_operand.vmem [shape: f32[1,128], index: 4, kind: input, shape index: {}]
  %s5 = inlined_call_operand.vmem [shape: f32[128,128], index: 5, kind: input, shape index: {}]
  %s6 = inlined_call_operand.vmem [shape: f32[1,128], index: 6, kind: input, shape index: {}]
  %s7 = inlined_call_operand.vmem [shape: f32[128,128], index: 7, kind: input, shape index: {}]
  %s8 = inlined_call_operand.vmem [shape: f32[1,128], index: 8, kind: input, shape index: {}]
  %s9 = inlined_call_operand.vmem [shape: f32[128,128], index: 9, kind: input, shape index: {}]
  %s10 = inlined_call_operand.vmem [shape: f32[1,128], index: 10, kind: input, shape index: {}]
  %s11 = inlined_call_operand.vmem [shape: f32[128,128], index: 11, kind: input, shape index: {}]
  %s12 = inlined_call_operand.vmem [shape: f32[1,128], index: 12, kind: input, shape index: {}]
  %s13 = inlined_call_operand.hbm [shape: f32[8,128], index: 13, kind: output, shape index: {}]
  %s14 = sld [smem:[#allocation0]]
  $region62: #{residual_net_forward.1} parent=0
    _
  %s16 = ssub.s32 1, %s14
  %s17 = scalar_select 0, %s16, %s14
  $region1: #{residual_net_forward.1} parent=0
    #allocation2 [shape = 'u8[4096]{0}', space=vmem, size = 0x1000, scoped, tag = 'output window, operand 0, single buffered']
    #allocation3 [shape = 's32[1]{0}', space=sflag, size = 0x4, scoped, tag = 'scoped memory for residual_net_forward.1']
    %18 = vsyncpa [#allocation3], 0
    // Predicated region
    $region2: #{residual_net_forward.1} parent=1 // pred_check
      _
    $region3: #{residual_net_forward.1} parent=1 // pred_check_branch
      %20 = sbr.rel (0) target = $region5
    $region4: #{residual_net_forward.1} parent=1 // pred_region
      _
    $region5: #{residual_net_forward.1} parent=1 // pred_fallthru
      _
    // Predicated region
    $region6: #{residual_net_forward.1} parent=1 // pred_check
      _
    $region7: #{residual_net_forward.1} parent=1 // pred_check_branch
      %22 = sbr.rel (0) target = $region9
    $region8: #{residual_net_forward.1} parent=1 // pred_region
      _
    $region9: #{residual_net_forward.1} parent=1 // pred_fallthru
      _
    // Predicated region
    $region10: #{residual_net_forward.1} parent=1 // pred_check
      _
    $region11: #{residual_net_forward.1} parent=1 // pred_check_branch
      %24 = sbr.rel (0) target = $region13
    $region12: #{residual_net_forward.1} parent=1 // pred_region
      _
    $region13: #{residual_net_forward.1} parent=1 // pred_fallthru
      _
    // Predicated region
    $region14: #{residual_net_forward.1} parent=1 // pred_check
      _
    $region15: #{residual_net_forward.1} parent=1 // pred_check_branch
      %26 = sbr.rel (0) target = $region17
    $region16: #{residual_net_forward.1} parent=1 // pred_region
      _
    $region17: #{residual_net_forward.1} parent=1 // pred_fallthru
      _
    // Predicated region
    $region18: #{residual_net_forward.1} parent=1 // pred_check
      _
    $region19: #{residual_net_forward.1} parent=1 // pred_check_branch
      %28 = sbr.rel (0) target = $region21
    $region20: #{residual_net_forward.1} parent=1 // pred_region
      _
    $region21: #{residual_net_forward.1} parent=1 // pred_fallthru
      _
    // Predicated region
    $region22: #{residual_net_forward.1} parent=1 // pred_check
      _
    $region23: #{residual_net_forward.1} parent=1 // pred_check_branch
      %30 = sbr.rel (0) target = $region25
    $region24: #{residual_net_forward.1} parent=1 // pred_region
      _
    $region25: #{residual_net_forward.1} parent=1 // pred_fallthru
      _
    // Predicated region
    $region26: #{residual_net_forward.1} parent=1 // pred_check
      _
    $region27: #{residual_net_forward.1} parent=1 // pred_check_branch
      %32 = sbr.rel (0) target = $region29
    $region28: #{residual_net_forward.1} parent=1 // pred_region
      _
    $region29: #{residual_net_forward.1} parent=1 // pred_fallthru
      _
    // Predicated region
    $region30: #{residual_net_forward.1} parent=1 // pred_check
      _
    $region31: #{residual_net_forward.1} parent=1 // pred_check_branch
      %34 = sbr.rel (0) target = $region33
    $region32: #{residual_net_forward.1} parent=1 // pred_region
      _
    $region33: #{residual_net_forward.1} parent=1 // pred_fallthru
      _
    // Predicated region
    $region34: #{residual_net_forward.1} parent=1 // pred_check
      _
    $region35: #{residual_net_forward.1} parent=1 // pred_check_branch
      %36 = sbr.rel (0) target = $region37
    $region36: #{residual_net_forward.1} parent=1 // pred_region
      _
    $region37: #{residual_net_forward.1} parent=1 // pred_fallthru
      _
    // Predicated region
    $region38: #{residual_net_forward.1} parent=1 // pred_check
      _
    $region39: #{residual_net_forward.1} parent=1 // pred_check_branch
      %38 = sbr.rel (0) target = $region41
    $region40: #{residual_net_forward.1} parent=1 // pred_region
      _
    $region41: #{residual_net_forward.1} parent=1 // pred_fallthru
      _
    // Predicated region
    $region42: #{residual_net_forward.1} parent=1 // pred_check
      _
    $region43: #{residual_net_forward.1} parent=1 // pred_check_branch
      %40 = sbr.rel (0) target = $region45
    $region44: #{residual_net_forward.1} parent=1 // pred_region
      _
    $region45: #{residual_net_forward.1} parent=1 // pred_fallthru
      _
    // Predicated region
    $region46: #{residual_net_forward.1} parent=1 // pred_check
      _
    $region47: #{residual_net_forward.1} parent=1 // pred_check_branch
      %42 = sbr.rel (0) target = $region49
    $region48: #{residual_net_forward.1} parent=1 // pred_region
      _
    $region49: #{residual_net_forward.1} parent=1 // pred_fallthru
      _
    // Predicated region
    $region50: #{residual_net_forward.1} parent=1 // pred_check
      _
    $region51: #{residual_net_forward.1} parent=1 // pred_check_branch
      %44 = sbr.rel (0) target = $region53
    $region52: #{residual_net_forward.1} parent=1 // pred_region
      _
    $region53: #{residual_net_forward.1} parent=1 // pred_fallthru
      _
    %v45 = vld [vmem:[%s0] sm:$0xff]
    %v46 = vld [vmem:[%s1] sm:$0xff]
    %v47 = vld [vmem:[%s1 + $0x8] sm:$0xff]
    %v48 = vld [vmem:[%s1 + $0x10] sm:$0xff]
    %v49 = vld [vmem:[%s1 + $0x18] sm:$0xff]
    %v50 = vld [vmem:[%s1 + $0x20] sm:$0xff]
    %v51 = vld [vmem:[%s1 + $0x28] sm:$0xff]
    %v52 = vld [vmem:[%s1 + $0x30] sm:$0xff]
    %v53 = vld [vmem:[%s1 + $0x38] sm:$0xff]
    %v54 = vld [vmem:[%s1 + $0x40] sm:$0xff]
    %v55 = vld [vmem:[%s1 + $0x48] sm:$0xff]
    %v56 = vld [vmem:[%s1 + $0x50] sm:$0xff]
    %v57 = vld [vmem:[%s1 + $0x58] sm:$0xff]
    %v58 = vld [vmem:[%s1 + $0x60] sm:$0xff]
    %v59 = vld [vmem:[%s1 + $0x68] sm:$0xff]
    %v60 = vld [vmem:[%s1 + $0x70] sm:$0xff]
    %v61 = vld [vmem:[%s1 + $0x78] sm:$0xff]
    %v62 = vld [vmem:[%s2] sm:$0x1]
    %v64 = vlaneseq
    %v65 = vshrl.u32 %v64, 7
    %v66 = vsub.s32 0, %v65
    %v67 = vrot.slane %v62, %v66
    %69 = vmatprep.subr.mxu0 0.0
    %70 = vmatpush1.msra.mxu0 %v61
    %71 = vmatprep.subr.mxu0 0.0
    %72 = vmatpush1.msra.mxu0 %v60
    %73 = vmatprep.subr.mxu0 0.0
    %74 = vmatpush1.msra.mxu0 %v59
    %75 = vmatprep.subr.mxu0 0.0
    %76 = vmatpush1.msra.mxu0 %v58
    %77 = vmatprep.subr.mxu0 0.0
    %78 = vmatpush1.msra.mxu0 %v57
    %79 = vmatprep.subr.mxu0 0.0
    %80 = vmatpush1.msra.mxu0 %v56
    %81 = vmatprep.subr.mxu0 0.0
    %82 = vmatpush1.msra.mxu0 %v55
    %83 = vmatprep.subr.mxu0 0.0
    %84 = vmatpush1.msra.mxu0 %v54
    %85 = vmatprep.subr.mxu0 0.0
    %86 = vmatpush1.msra.mxu0 %v53
    %87 = vmatprep.subr.mxu0 0.0
    %88 = vmatpush1.msra.mxu0 %v52
    %89 = vmatprep.subr.mxu0 0.0
    %90 = vmatpush1.msra.mxu0 %v51
    %91 = vmatprep.subr.mxu0 0.0
    %92 = vmatpush1.msra.mxu0 %v50
    %93 = vmatprep.subr.mxu0 0.0
    %94 = vmatpush1.msra.mxu0 %v49
    %95 = vmatprep.subr.mxu0 0.0
    %96 = vmatpush1.msra.mxu0 %v48
    %97 = vmatprep.subr.mxu0 0.0
    %98 = vmatpush1.msra.mxu0 %v47
    %99 = vmatprep.subr.mxu0 0.0
    %100 = vmatpush1.msra.mxu0 %v46
    %101 = vmatprep.subr.mxu0 0.0
    %102 = vmatpush2.msra.mxu0 0.0
    %103 = vmatprep.subr.mxu0 0.0
    %104 = vmatpush2.msra.mxu0 0.0
    %105 = vmatprep.subr.mxu0 0.0
    %106 = vmatpush2.msra.mxu0 0.0
    %107 = vmatprep.subr.mxu0 0.0
    %108 = vmatpush2.msra.mxu0 0.0
    %109 = vmatprep.subr.mxu0 0.0
    %110 = vmatpush2.msra.mxu0 0.0
    %111 = vmatprep.subr.mxu0 0.0
    %112 = vmatpush2.msra.mxu0 0.0
    %113 = vmatprep.subr.mxu0 0.0
    %114 = vmatpush2.msra.mxu0 0.0
    %115 = vmatprep.subr.mxu0 0.0
    %116 = vmatpush2.msra.mxu0 0.0
    %117 = vmatprep.subr.mxu0 0.0
    %118 = vmatpush2.msra.mxu0 0.0
    %119 = vmatprep.subr.mxu0 0.0
    %120 = vmatpush2.msra.mxu0 0.0
    %121 = vmatprep.subr.mxu0 0.0
    %122 = vmatpush2.msra.mxu0 0.0
    %123 = vmatprep.subr.mxu0 0.0
    %124 = vmatpush2.msra.mxu0 0.0
    %125 = vmatprep.subr.mxu0 0.0
    %126 = vmatpush2.msra.mxu0 0.0
    %127 = vmatprep.subr.mxu0 0.0
    %128 = vmatpush2.msra.mxu0 0.0
    %129 = vmatprep.subr.mxu0 0.0
    %130 = vmatpush2.msra.mxu0 0.0
    %131 = vmatprep.subr.mxu0 0.0
    %132 = vmatpush2.msra.mxu0 0.0
    %133 = vmatprep.mubr.f32.mxu0 0.0
    %134 = vmatmul.mubr.f32.gmra.mxu0 %v45
    %v135 = vpop.f32.mrf.mxu0
    %v136 = vadd.f32 %v67, %v135
    %v137 = vpop.f32.mrf.mxu0
    %138 = vdwg.mxu0
    %v139 = vmax.f32 %v136, 0.0
    %v140 = vld [vmem:[%s3] sm:$0xff]
    %v141 = vld [vmem:[%s3 + $0x8] sm:$0xff]
    %v142 = vld [vmem:[%s3 + $0x10] sm:$0xff]
    %v143 = vld [vmem:[%s3 + $0x18] sm:$0xff]
    %v144 = vld [vmem:[%s3 + $0x20] sm:$0xff]
    %v145 = vld [vmem:[%s3 + $0x28] sm:$0xff]
    %v146 = vld [vmem:[%s3 + $0x30] sm:$0xff]
    %v147 = vld [vmem:[%s3 + $0x38] sm:$0xff]
    %v148 = vld [vmem:[%s3 + $0x40] sm:$0xff]
    %v149 = vld [vmem:[%s3 + $0x48] sm:$0xff]
    %v150 = vld [vmem:[%s3 + $0x50] sm:$0xff]
    %v151 = vld [vmem:[%s3 + $0x58] sm:$0xff]
    %v152 = vld [vmem:[%s3 + $0x60] sm:$0xff]
    %v153 = vld [vmem:[%s3 + $0x68] sm:$0xff]
    %v154 = vld [vmem:[%s3 + $0x70] sm:$0xff]
    %v155 = vld [vmem:[%s3 + $0x78] sm:$0xff]
    %v156 = vld [vmem:[%s4] sm:$0x1]
    %v158 = vlaneseq
    %v159 = vshrl.u32 %v158, 7
    %v160 = vsub.s32 0, %v159
    %v161 = vrot.slane %v156, %v160
    %163 = vmatprep.subr.mxu0 0.0
    %164 = vmatpush1.msra.mxu0 %v155
    %165 = vmatprep.subr.mxu0 0.0
    %166 = vmatpush1.msra.mxu0 %v154
    %167 = vmatprep.subr.mxu0 0.0
    %168 = vmatpush1.msra.mxu0 %v153
    %169 = vmatprep.subr.mxu0 0.0
    %170 = vmatpush1.msra.mxu0 %v152
    %171 = vmatprep.subr.mxu0 0.0
    %172 = vmatpush1.msra.mxu0 %v151
    %173 = vmatprep.subr.mxu0 0.0
    %174 = vmatpush1.msra.mxu0 %v150
    %175 = vmatprep.subr.mxu0 0.0
    %176 = vmatpush1.msra.mxu0 %v149
    %177 = vmatprep.subr.mxu0 0.0
    %178 = vmatpush1.msra.mxu0 %v148
    %179 = vmatprep.subr.mxu0 0.0
    %180 = vmatpush1.msra.mxu0 %v147
    %181 = vmatprep.subr.mxu0 0.0
    %182 = vmatpush1.msra.mxu0 %v146
    %183 = vmatprep.subr.mxu0 0.0
    %184 = vmatpush1.msra.mxu0 %v145
    %185 = vmatprep.subr.mxu0 0.0
    %186 = vmatpush1.msra.mxu0 %v144
    %187 = vmatprep.subr.mxu0 0.0
    %188 = vmatpush1.msra.mxu0 %v143
    %189 = vmatprep.subr.mxu0 0.0
    %190 = vmatpush1.msra.mxu0 %v142
    %191 = vmatprep.subr.mxu0 0.0
    %192 = vmatpush1.msra.mxu0 %v141
    %193 = vmatprep.subr.mxu0 0.0
    %194 = vmatpush1.msra.mxu0 %v140
    %195 = vmatprep.subr.mxu0 0.0
    %196 = vmatpush2.msra.mxu0 0.0
    %197 = vmatprep.subr.mxu0 0.0
    %198 = vmatpush2.msra.mxu0 0.0
    %199 = vmatprep.subr.mxu0 0.0
    %200 = vmatpush2.msra.mxu0 0.0
    %201 = vmatprep.subr.mxu0 0.0
    %202 = vmatpush2.msra.mxu0 0.0
    %203 = vmatprep.subr.mxu0 0.0
    %204 = vmatpush2.msra.mxu0 0.0
    %205 = vmatprep.subr.mxu0 0.0
    %206 = vmatpush2.msra.mxu0 0.0
    %207 = vmatprep.subr.mxu0 0.0
    %208 = vmatpush2.msra.mxu0 0.0
    %209 = vmatprep.subr.mxu0 0.0
    %210 = vmatpush2.msra.mxu0 0.0
    %211 = vmatprep.subr.mxu0 0.0
    %212 = vmatpush2.msra.mxu0 0.0
    %213 = vmatprep.subr.mxu0 0.0
    %214 = vmatpush2.msra.mxu0 0.0
    %215 = vmatprep.subr.mxu0 0.0
    %216 = vmatpush2.msra.mxu0 0.0
    %217 = vmatprep.subr.mxu0 0.0
    %218 = vmatpush2.msra.mxu0 0.0
    %219 = vmatprep.subr.mxu0 0.0
    %220 = vmatpush2.msra.mxu0 0.0
    %221 = vmatprep.subr.mxu0 0.0
    %222 = vmatpush2.msra.mxu0 0.0
    %223 = vmatprep.subr.mxu0 0.0
    %224 = vmatpush2.msra.mxu0 0.0
    %225 = vmatprep.subr.mxu0 0.0
    %226 = vmatpush2.msra.mxu0 0.0
    %227 = vmatprep.mubr.f32.mxu0 0.0
    %228 = vmatmul.mubr.f32.gmra.mxu0 %v139
    %v229 = vpop.f32.mrf.mxu0
    %v230 = vadd.f32 %v161, %v229
    %v231 = vpop.f32.mrf.mxu0
    %232 = vdwg.mxu0
    %v233 = vmax.f32 %v230, 0.0
    %v234 = vld [vmem:[%s5] sm:$0xff]
    %v235 = vld [vmem:[%s5 + $0x8] sm:$0xff]
    %v236 = vld [vmem:[%s5 + $0x10] sm:$0xff]
    %v237 = vld [vmem:[%s5 + $0x18] sm:$0xff]
    %v238 = vld [vmem:[%s5 + $0x20] sm:$0xff]
    %v239 = vld [vmem:[%s5 + $0x28] sm:$0xff]
    %v240 = vld [vmem:[%s5 + $0x30] sm:$0xff]
    %v241 = vld [vmem:[%s5 + $0x38] sm:$0xff]
    %v242 = vld [vmem:[%s5 + $0x40] sm:$0xff]
    %v243 = vld [vmem:[%s5 + $0x48] sm:$0xff]
    %v244 = vld [vmem:[%s5 + $0x50] sm:$0xff]
    %v245 = vld [vmem:[%s5 + $0x58] sm:$0xff]
    %v246 = vld [vmem:[%s5 + $0x60] sm:$0xff]
    %v247 = vld [vmem:[%s5 + $0x68] sm:$0xff]
    %v248 = vld [vmem:[%s5 + $0x70] sm:$0xff]
    %v249 = vld [vmem:[%s5 + $0x78] sm:$0xff]
    %v250 = vld [vmem:[%s6] sm:$0x1]
    %v252 = vlaneseq
    %v253 = vshrl.u32 %v252, 7
    %v254 = vsub.s32 0, %v253
    %v255 = vrot.slane %v250, %v254
    %257 = vmatprep.subr.mxu0 0.0
    %258 = vmatpush1.msra.mxu0 %v249
    %259 = vmatprep.subr.mxu0 0.0
    %260 = vmatpush1.msra.mxu0 %v248
    %261 = vmatprep.subr.mxu0 0.0
    %262 = vmatpush1.msra.mxu0 %v247
    %263 = vmatprep.subr.mxu0 0.0
    %264 = vmatpush1.msra.mxu0 %v246
    %265 = vmatprep.subr.mxu0 0.0
    %266 = vmatpush1.msra.mxu0 %v245
    %267 = vmatprep.subr.mxu0 0.0
    %268 = vmatpush1.msra.mxu0 %v244
    %269 = vmatprep.subr.mxu0 0.0
    %270 = vmatpush1.msra.mxu0 %v243
    %271 = vmatprep.subr.mxu0 0.0
    %272 = vmatpush1.msra.mxu0 %v242
    %273 = vmatprep.subr.mxu0 0.0
    %274 = vmatpush1.msra.mxu0 %v241
    %275 = vmatprep.subr.mxu0 0.0
    %276 = vmatpush1.msra.mxu0 %v240
    %277 = vmatprep.subr.mxu0 0.0
    %278 = vmatpush1.msra.mxu0 %v239
    %279 = vmatprep.subr.mxu0 0.0
    %280 = vmatpush1.msra.mxu0 %v238
    %281 = vmatprep.subr.mxu0 0.0
    %282 = vmatpush1.msra.mxu0 %v237
    %283 = vmatprep.subr.mxu0 0.0
    %284 = vmatpush1.msra.mxu0 %v236
    %285 = vmatprep.subr.mxu0 0.0
    %286 = vmatpush1.msra.mxu0 %v235
    %287 = vmatprep.subr.mxu0 0.0
    %288 = vmatpush1.msra.mxu0 %v234
    %289 = vmatprep.subr.mxu0 0.0
    %290 = vmatpush2.msra.mxu0 0.0
    %291 = vmatprep.subr.mxu0 0.0
    %292 = vmatpush2.msra.mxu0 0.0
    %293 = vmatprep.subr.mxu0 0.0
    %294 = vmatpush2.msra.mxu0 0.0
    %295 = vmatprep.subr.mxu0 0.0
    %296 = vmatpush2.msra.mxu0 0.0
    %297 = vmatprep.subr.mxu0 0.0
    %298 = vmatpush2.msra.mxu0 0.0
    %299 = vmatprep.subr.mxu0 0.0
    %300 = vmatpush2.msra.mxu0 0.0
    %301 = vmatprep.subr.mxu0 0.0
    %302 = vmatpush2.msra.mxu0 0.0
    %303 = vmatprep.subr.mxu0 0.0
    %304 = vmatpush2.msra.mxu0 0.0
    %305 = vmatprep.subr.mxu0 0.0
    %306 = vmatpush2.msra.mxu0 0.0
    %307 = vmatprep.subr.mxu0 0.0
    %308 = vmatpush2.msra.mxu0 0.0
    %309 = vmatprep.subr.mxu0 0.0
    %310 = vmatpush2.msra.mxu0 0.0
    %311 = vmatprep.subr.mxu0 0.0
    %312 = vmatpush2.msra.mxu0 0.0
    %313 = vmatprep.subr.mxu0 0.0
    %314 = vmatpush2.msra.mxu0 0.0
    %315 = vmatprep.subr.mxu0 0.0
    %316 = vmatpush2.msra.mxu0 0.0
    %317 = vmatprep.subr.mxu0 0.0
    %318 = vmatpush2.msra.mxu0 0.0
    %319 = vmatprep.subr.mxu0 0.0
    %320 = vmatpush2.msra.mxu0 0.0
    %321 = vmatprep.mubr.f32.mxu0 0.0
    %322 = vmatmul.mubr.f32.gmra.mxu0 %v233
    %v323 = vpop.f32.mrf.mxu0
    %v324 = vadd.f32 %v255, %v323
    %v325 = vpop.f32.mrf.mxu0
    %326 = vdwg.mxu0
    %v327 = vadd.f32 %v136, %v324
    %v328 = vmax.f32 %v327, 0.0
    %v329 = vld [vmem:[%s7] sm:$0xff]
    %v330 = vld [vmem:[%s7 + $0x8] sm:$0xff]
    %v331 = vld [vmem:[%s7 + $0x10] sm:$0xff]
    %v332 = vld [vmem:[%s7 + $0x18] sm:$0xff]
    %v333 = vld [vmem:[%s7 + $0x20] sm:$0xff]
    %v334 = vld [vmem:[%s7 + $0x28] sm:$0xff]
    %v335 = vld [vmem:[%s7 + $0x30] sm:$0xff]
    %v336 = vld [vmem:[%s7 + $0x38] sm:$0xff]
    %v337 = vld [vmem:[%s7 + $0x40] sm:$0xff]
    %v338 = vld [vmem:[%s7 + $0x48] sm:$0xff]
    %v339 = vld [vmem:[%s7 + $0x50] sm:$0xff]
    %v340 = vld [vmem:[%s7 + $0x58] sm:$0xff]
    %v341 = vld [vmem:[%s7 + $0x60] sm:$0xff]
    %v342 = vld [vmem:[%s7 + $0x68] sm:$0xff]
    %v343 = vld [vmem:[%s7 + $0x70] sm:$0xff]
    %v344 = vld [vmem:[%s7 + $0x78] sm:$0xff]
    %v345 = vld [vmem:[%s8] sm:$0x1]
    %v347 = vlaneseq
    %v348 = vshrl.u32 %v347, 7
    %v349 = vsub.s32 0, %v348
    %v350 = vrot.slane %v345, %v349
    %352 = vmatprep.subr.mxu0 0.0
    %353 = vmatpush1.msra.mxu0 %v344
    %354 = vmatprep.subr.mxu0 0.0
    %355 = vmatpush1.msra.mxu0 %v343
    %356 = vmatprep.subr.mxu0 0.0
    %357 = vmatpush1.msra.mxu0 %v342
    %358 = vmatprep.subr.mxu0 0.0
    %359 = vmatpush1.msra.mxu0 %v341
    %360 = vmatprep.subr.mxu0 0.0
    %361 = vmatpush1.msra.mxu0 %v340
    %362 = vmatprep.subr.mxu0 0.0
    %363 = vmatpush1.msra.mxu0 %v339
    %364 = vmatprep.subr.mxu0 0.0
    %365 = vmatpush1.msra.mxu0 %v338
    %366 = vmatprep.subr.mxu0 0.0
    %367 = vmatpush1.msra.mxu0 %v337
    %368 = vmatprep.subr.mxu0 0.0
    %369 = vmatpush1.msra.mxu0 %v336
    %370 = vmatprep.subr.mxu0 0.0
    %371 = vmatpush1.msra.mxu0 %v335
    %372 = vmatprep.subr.mxu0 0.0
    %373 = vmatpush1.msra.mxu0 %v334
    %374 = vmatprep.subr.mxu0 0.0
    %375 = vmatpush1.msra.mxu0 %v333
    %376 = vmatprep.subr.mxu0 0.0
    %377 = vmatpush1.msra.mxu0 %v332
    %378 = vmatprep.subr.mxu0 0.0
    %379 = vmatpush1.msra.mxu0 %v331
    %380 = vmatprep.subr.mxu0 0.0
    %381 = vmatpush1.msra.mxu0 %v330
    %382 = vmatprep.subr.mxu0 0.0
    %383 = vmatpush1.msra.mxu0 %v329
    %384 = vmatprep.subr.mxu0 0.0
    %385 = vmatpush2.msra.mxu0 0.0
    %386 = vmatprep.subr.mxu0 0.0
    %387 = vmatpush2.msra.mxu0 0.0
    %388 = vmatprep.subr.mxu0 0.0
    %389 = vmatpush2.msra.mxu0 0.0
    %390 = vmatprep.subr.mxu0 0.0
    %391 = vmatpush2.msra.mxu0 0.0
    %392 = vmatprep.subr.mxu0 0.0
    %393 = vmatpush2.msra.mxu0 0.0
    %394 = vmatprep.subr.mxu0 0.0
    %395 = vmatpush2.msra.mxu0 0.0
    %396 = vmatprep.subr.mxu0 0.0
    %397 = vmatpush2.msra.mxu0 0.0
    %398 = vmatprep.subr.mxu0 0.0
    %399 = vmatpush2.msra.mxu0 0.0
    %400 = vmatprep.subr.mxu0 0.0
    %401 = vmatpush2.msra.mxu0 0.0
    %402 = vmatprep.subr.mxu0 0.0
    %403 = vmatpush2.msra.mxu0 0.0
    %404 = vmatprep.subr.mxu0 0.0
    %405 = vmatpush2.msra.mxu0 0.0
    %406 = vmatprep.subr.mxu0 0.0
    %407 = vmatpush2.msra.mxu0 0.0
    %408 = vmatprep.subr.mxu0 0.0
    %409 = vmatpush2.msra.mxu0 0.0
    %410 = vmatprep.subr.mxu0 0.0
    %411 = vmatpush2.msra.mxu0 0.0
    %412 = vmatprep.subr.mxu0 0.0
    %413 = vmatpush2.msra.mxu0 0.0
    %414 = vmatprep.subr.mxu0 0.0
    %415 = vmatpush2.msra.mxu0 0.0
    %416 = vmatprep.mubr.f32.mxu0 0.0
    %417 = vmatmul.mubr.f32.gmra.mxu0 %v328
    %v418 = vpop.f32.mrf.mxu0
    %v419 = vadd.f32 %v350, %v418
    %v420 = vpop.f32.mrf.mxu0
    %421 = vdwg.mxu0
    %v422 = vmax.f32 %v419, 0.0
    %v423 = vld [vmem:[%s9] sm:$0xff]
    %v424 = vld [vmem:[%s9 + $0x8] sm:$0xff]
    %v425 = vld [vmem:[%s9 + $0x10] sm:$0xff]
    %v426 = vld [vmem:[%s9 + $0x18] sm:$0xff]
    %v427 = vld [vmem:[%s9 + $0x20] sm:$0xff]
    %v428 = vld [vmem:[%s9 + $0x28] sm:$0xff]
    %v429 = vld [vmem:[%s9 + $0x30] sm:$0xff]
    %v430 = vld [vmem:[%s9 + $0x38] sm:$0xff]
    %v431 = vld [vmem:[%s9 + $0x40] sm:$0xff]
    %v432 = vld [vmem:[%s9 + $0x48] sm:$0xff]
    %v433 = vld [vmem:[%s9 + $0x50] sm:$0xff]
    %v434 = vld [vmem:[%s9 + $0x58] sm:$0xff]
    %v435 = vld [vmem:[%s9 + $0x60] sm:$0xff]
    %v436 = vld [vmem:[%s9 + $0x68] sm:$0xff]
    %v437 = vld [vmem:[%s9 + $0x70] sm:$0xff]
    %v438 = vld [vmem:[%s9 + $0x78] sm:$0xff]
    %v439 = vld [vmem:[%s10] sm:$0x1]
    %v441 = vlaneseq
    %v442 = vshrl.u32 %v441, 7
    %v443 = vsub.s32 0, %v442
    %v444 = vrot.slane %v439, %v443
    %446 = vmatprep.subr.mxu0 0.0
    %447 = vmatpush1.msra.mxu0 %v438
    %448 = vmatprep.subr.mxu0 0.0
    %449 = vmatpush1.msra.mxu0 %v437
    %450 = vmatprep.subr.mxu0 0.0
    %451 = vmatpush1.msra.mxu0 %v436
    %452 = vmatprep.subr.mxu0 0.0
    %453 = vmatpush1.msra.mxu0 %v435
    %454 = vmatprep.subr.mxu0 0.0
    %455 = vmatpush1.msra.mxu0 %v434
    %456 = vmatprep.subr.mxu0 0.0
    %457 = vmatpush1.msra.mxu0 %v433
    %458 = vmatprep.subr.mxu0 0.0
    %459 = vmatpush1.msra.mxu0 %v432
    %460 = vmatprep.subr.mxu0 0.0
    %461 = vmatpush1.msra.mxu0 %v431
    %462 = vmatprep.subr.mxu0 0.0
    %463 = vmatpush1.msra.mxu0 %v430
    %464 = vmatprep.subr.mxu0 0.0
    %465 = vmatpush1.msra.mxu0 %v429
    %466 = vmatprep.subr.mxu0 0.0
    %467 = vmatpush1.msra.mxu0 %v428
    %468 = vmatprep.subr.mxu0 0.0
    %469 = vmatpush1.msra.mxu0 %v427
    %470 = vmatprep.subr.mxu0 0.0
    %471 = vmatpush1.msra.mxu0 %v426
    %472 = vmatprep.subr.mxu0 0.0
    %473 = vmatpush1.msra.mxu0 %v425
    %474 = vmatprep.subr.mxu0 0.0
    %475 = vmatpush1.msra.mxu0 %v424
    %476 = vmatprep.subr.mxu0 0.0
    %477 = vmatpush1.msra.mxu0 %v423
    %478 = vmatprep.subr.mxu0 0.0
    %479 = vmatpush2.msra.mxu0 0.0
    %480 = vmatprep.subr.mxu0 0.0
    %481 = vmatpush2.msra.mxu0 0.0
    %482 = vmatprep.subr.mxu0 0.0
    %483 = vmatpush2.msra.mxu0 0.0
    %484 = vmatprep.subr.mxu0 0.0
    %485 = vmatpush2.msra.mxu0 0.0
    %486 = vmatprep.subr.mxu0 0.0
    %487 = vmatpush2.msra.mxu0 0.0
    %488 = vmatprep.subr.mxu0 0.0
    %489 = vmatpush2.msra.mxu0 0.0
    %490 = vmatprep.subr.mxu0 0.0
    %491 = vmatpush2.msra.mxu0 0.0
    %492 = vmatprep.subr.mxu0 0.0
    %493 = vmatpush2.msra.mxu0 0.0
    %494 = vmatprep.subr.mxu0 0.0
    %495 = vmatpush2.msra.mxu0 0.0
    %496 = vmatprep.subr.mxu0 0.0
    %497 = vmatpush2.msra.mxu0 0.0
    %498 = vmatprep.subr.mxu0 0.0
    %499 = vmatpush2.msra.mxu0 0.0
    %500 = vmatprep.subr.mxu0 0.0
    %501 = vmatpush2.msra.mxu0 0.0
    %502 = vmatprep.subr.mxu0 0.0
    %503 = vmatpush2.msra.mxu0 0.0
    %504 = vmatprep.subr.mxu0 0.0
    %505 = vmatpush2.msra.mxu0 0.0
    %506 = vmatprep.subr.mxu0 0.0
    %507 = vmatpush2.msra.mxu0 0.0
    %508 = vmatprep.subr.mxu0 0.0
    %509 = vmatpush2.msra.mxu0 0.0
    %510 = vmatprep.mubr.f32.mxu0 0.0
    %511 = vmatmul.mubr.f32.gmra.mxu0 %v422
    %v512 = vpop.f32.mrf.mxu0
    %v513 = vadd.f32 %v444, %v512
    %v514 = vpop.f32.mrf.mxu0
    %515 = vdwg.mxu0
    %v516 = vadd.f32 %v327, %v513
    %v517 = vld [vmem:[%s11] sm:$0xff]
    %v518 = vld [vmem:[%s11 + $0x8] sm:$0xff]
    %v519 = vld [vmem:[%s11 + $0x10] sm:$0xff]
    %v520 = vld [vmem:[%s11 + $0x18] sm:$0xff]
    %v521 = vld [vmem:[%s11 + $0x20] sm:$0xff]
    %v522 = vld [vmem:[%s11 + $0x28] sm:$0xff]
    %v523 = vld [vmem:[%s11 + $0x30] sm:$0xff]
    %v524 = vld [vmem:[%s11 + $0x38] sm:$0xff]
    %v525 = vld [vmem:[%s11 + $0x40] sm:$0xff]
    %v526 = vld [vmem:[%s11 + $0x48] sm:$0xff]
    %v527 = vld [vmem:[%s11 + $0x50] sm:$0xff]
    %v528 = vld [vmem:[%s11 + $0x58] sm:$0xff]
    %v529 = vld [vmem:[%s11 + $0x60] sm:$0xff]
    %v530 = vld [vmem:[%s11 + $0x68] sm:$0xff]
    %v531 = vld [vmem:[%s11 + $0x70] sm:$0xff]
    %v532 = vld [vmem:[%s11 + $0x78] sm:$0xff]
    %v533 = vld [vmem:[%s12] sm:$0x1]
    %v535 = vlaneseq
    %v536 = vshrl.u32 %v535, 7
    %v537 = vsub.s32 0, %v536
    %v538 = vrot.slane %v533, %v537
    %540 = vmatprep.subr.mxu0 0.0
    %541 = vmatpush1.msra.mxu0 %v532
    %542 = vmatprep.subr.mxu0 0.0
    %543 = vmatpush1.msra.mxu0 %v531
    %544 = vmatprep.subr.mxu0 0.0
    %545 = vmatpush1.msra.mxu0 %v530
    %546 = vmatprep.subr.mxu0 0.0
    %547 = vmatpush1.msra.mxu0 %v529
    %548 = vmatprep.subr.mxu0 0.0
    %549 = vmatpush1.msra.mxu0 %v528
    %550 = vmatprep.subr.mxu0 0.0
    %551 = vmatpush1.msra.mxu0 %v527
    %552 = vmatprep.subr.mxu0 0.0
    %553 = vmatpush1.msra.mxu0 %v526
    %554 = vmatprep.subr.mxu0 0.0
    %555 = vmatpush1.msra.mxu0 %v525
    %556 = vmatprep.subr.mxu0 0.0
    %557 = vmatpush1.msra.mxu0 %v524
    %558 = vmatprep.subr.mxu0 0.0
    %559 = vmatpush1.msra.mxu0 %v523
    %560 = vmatprep.subr.mxu0 0.0
    %561 = vmatpush1.msra.mxu0 %v522
    %562 = vmatprep.subr.mxu0 0.0
    %563 = vmatpush1.msra.mxu0 %v521
    %564 = vmatprep.subr.mxu0 0.0
    %565 = vmatpush1.msra.mxu0 %v520
    %566 = vmatprep.subr.mxu0 0.0
    %567 = vmatpush1.msra.mxu0 %v519
    %568 = vmatprep.subr.mxu0 0.0
    %569 = vmatpush1.msra.mxu0 %v518
    %570 = vmatprep.subr.mxu0 0.0
    %571 = vmatpush1.msra.mxu0 %v517
    %572 = vmatprep.subr.mxu0 0.0
    %573 = vmatpush2.msra.mxu0 0.0
    %574 = vmatprep.subr.mxu0 0.0
    %575 = vmatpush2.msra.mxu0 0.0
    %576 = vmatprep.subr.mxu0 0.0
    %577 = vmatpush2.msra.mxu0 0.0
    %578 = vmatprep.subr.mxu0 0.0
    %579 = vmatpush2.msra.mxu0 0.0
    %580 = vmatprep.subr.mxu0 0.0
    %581 = vmatpush2.msra.mxu0 0.0
    %582 = vmatprep.subr.mxu0 0.0
    %583 = vmatpush2.msra.mxu0 0.0
    %584 = vmatprep.subr.mxu0 0.0
    %585 = vmatpush2.msra.mxu0 0.0
    %586 = vmatprep.subr.mxu0 0.0
    %587 = vmatpush2.msra.mxu0 0.0
    %588 = vmatprep.subr.mxu0 0.0
    %589 = vmatpush2.msra.mxu0 0.0
    %590 = vmatprep.subr.mxu0 0.0
    %591 = vmatpush2.msra.mxu0 0.0
    %592 = vmatprep.subr.mxu0 0.0
    %593 = vmatpush2.msra.mxu0 0.0
    %594 = vmatprep.subr.mxu0 0.0
    %595 = vmatpush2.msra.mxu0 0.0
    %596 = vmatprep.subr.mxu0 0.0
    %597 = vmatpush2.msra.mxu0 0.0
    %598 = vmatprep.subr.mxu0 0.0
    %599 = vmatpush2.msra.mxu0 0.0
    %600 = vmatprep.subr.mxu0 0.0
    %601 = vmatpush2.msra.mxu0 0.0
    %602 = vmatprep.subr.mxu0 0.0
    %603 = vmatpush2.msra.mxu0 0.0
    %604 = vmatprep.mubr.f32.mxu0 0.0
    %605 = vmatmul.mubr.f32.gmra.mxu0 %v516
    %v606 = vpop.f32.mrf.mxu0
    %v607 = vadd.f32 %v538, %v606
    %v608 = vpop.f32.mrf.mxu0
    %609 = vdwg.mxu0
    %610 = vst [vmem:[#allocation2] sm:$0xff] %v607
    // Predicated region
    $region54: #{residual_net_forward.1} parent=1 // pred_check
      _
    $region55: #{residual_net_forward.1} parent=1 // pred_check_branch
      %612 = sbr.rel (0) target = $region57
    $region56: #{residual_net_forward.1} parent=1 // pred_region
      %s614 = ssub.s32 128, 128
      %615 = vsyncadd [#allocation3], %s614
      %s617 = sshll.u32 [#allocation2], 4
      %s618 = int_to_ptr.vmem [resolvable:$true] %s617
      %620 = dma.vmem_to_hbm [thread:$0]  %s618, 128, %s13, [#allocation3]
    $region57: #{residual_net_forward.1} parent=1 // pred_fallthru
      _
    // Predicated region
    $region58: #{residual_net_forward.1} parent=1 // pred_check
      _
    $region59: #{residual_net_forward.1} parent=1 // pred_check_branch
      %622 = sbr.rel (0) target = $region61
    $region60: #{residual_net_forward.1} parent=1 // pred_region
      %623 = dma.done [#allocation3], 128
    $region61: #{residual_net_forward.1} parent=1 // pred_fallthru
      _
    %624 = vsyncpa [#allocation3], 1

</llo_original>
